<compile_context>
chip_gen: v7x
topology: tpu7x:2x2x1
jax: 0.10.0
libtpu: 0.0.40
codegen_flags: <defaults>
</compile_context>

<pallas_src>
import math

import jax
import jax.numpy as jnp
from jax.experimental import pallas as pl
from jax.experimental.pallas import tpu as pltpu

_MiB = 1024 * 1024


def _chip_config():
    """Returns (per-block byte budget, scoped-VMEM limit) tuned per TPU generation."""
    try:
        kind = jax.devices()[0].device_kind.lower()
    except Exception:  # pragma: no cover - defensive, fall through to defaults
        kind = ""
    if "v6" in kind:                          # v6e: 128 MiB VMEM, 32 MiB default scoped
        return 8 * _MiB, 64 * _MiB
    if "7x" in kind or "v7" in kind:          # v7x: only 64 MiB VMEM per TC -> stay modest
        return 4 * _MiB, 40 * _MiB
    if "v5 lite" in kind or "v5e" in kind:    # v5e: 16 MiB default scoped, 128 MiB physical
        return 3 * _MiB, 64 * _MiB
    return 3 * _MiB, 48 * _MiB                # unknown chip: conservative


def _make_kernel(C, hw_real, hw_pad):
    masked = hw_pad != hw_real

    def kernel(x_ref, w_ref, o_ref):
        # x_ref / o_ref: (C, Dt, HW_pad) VMEM blocks (batch dim squeezed)
        # w_ref: (C,) f32 conv weight in SMEM
        # 1x1x1 Conv3d == per-position channel-weighted sum. C sits on a major
        # (non-lane/sublane) axis, so this is a handful of VPU FMAs over (Dt, HW)
        # slabs with scalar SMEM weights.
        scores = x_ref[0] * w_ref[0]
        for c in range(1, C):
            scores = scores + x_ref[c] * w_ref[c]
        # NOTE: the Conv3d bias is a per-position constant -> it cancels inside the
        # softmax over H*W and is dropped entirely (no SMEM arg, no VPU add).

        if masked:
            # Pad lanes (host-side 128-multiple padding) must not enter the softmax.
            lane = jax.lax.broadcasted_iota(jnp.int32, scores.shape, 1)
            scores = jnp.where(lane < hw_real, scores, -jnp.inf)

        # Numerically-stable softmax over the flattened spatial (lane) axis,
        # independently per depth row.
        m = jnp.max(scores, axis=-1, keepdims=True)
        e = jnp.exp(scores - m)
        denom = jnp.sum(e, axis=-1, keepdims=True)
        # Exact reciprocal keeps the strict 1e-5 check; approx=True would move the
        # divide onto the EUP slot once a looser tolerance is acceptable.
        attn = e * pl.reciprocal(denom, approx=False)        # (Dt, HW_pad)

        # Gate the input features (broadcast over channels).
        for c in range(C):
            o_ref[c] = (attn * x_ref[c]).astype(o_ref.dtype)

    return kernel


def spatial_attention(x_ncdhw, weight, bias=None, *,
                      block_budget_bytes=None, vmem_limit_bytes=None):
    """SpatialAttention forward.

    x_ncdhw: (B, C, D, H, W); weight: (1, C, 1, 1, 1) Conv3d(C, 1, k=1) weight;
    bias: (1,) Conv3d bias -- accepted for API parity but intentionally unused:
    softmax over H*W is shift-invariant, so the per-position constant cancels.
    """
    B, C, D, H, W = x_ncdhw.shape
    HW = H * W
    isz = jnp.dtype(x_ncdhw.dtype).itemsize

    budget, vmem_limit = _chip_config()
    if block_budget_bytes is not None:
        budget = block_budget_bytes
    if vmem_limit_bytes is not None:
        vmem_limit = vmem_limit_bytes

    # Lane density: pad the flattened spatial axis to a multiple of 128 so output
    # stores are unmasked full-lane vst. No-op when H*W % 128 == 0 (the common case).
    HW_pad = -(-HW // 128) * 128

    # Free trailing-dim reshape only; the pad (if any) is the only extra HBM pass.
    x_k = x_ncdhw.reshape(B, C, D, HW)
    if HW_pad != HW:
        x_k = jnp.pad(x_k, ((0, 0), (0, 0), (0, 0), (0, HW_pad - HW)))
    w_k = weight.reshape(C).astype(jnp.float32)

    # ---- depth-tile sizing with full VMEM residency accounting ------------------
    # Resident bytes per depth slice: in block + out block, each double-buffered by
    # the pipeline (4x block bytes), PLUS ~3 materialized f32 (Dt, HW) softmax
    # temporaries (scores lives across the max, e across the sum, attn across the
    # gating). Keep total under ~70% of the scoped-VMEM limit we request below.
    sub = {4: 8, 2: 16, 1: 32}.get(isz, 8)         # sublane quantum per dtype
    block_bytes_per_d = C * HW_pad * isz
    resident_bytes_per_d = 4 * block_bytes_per_d + 3 * HW_pad * 4
    dt = max(1, min(budget // block_bytes_per_d,
                    int(vmem_limit * 0.7) // resident_bytes_per_d))
    if dt >= D:
        dt = D                                      # full depth dim: always legal
    else:
        dt = max(sub, (dt // sub) * sub)            # sublane-dense tile
        cand = dt                                   # prefer a tile that divides D
        while cand >= sub:
            if D % cand == 0:
                dt = cand
                break
            cand -= sub

    # v7x has 2 TensorCores: make sure at least 2 grid steps exist along a
    # "parallel" axis, otherwise one core (and its share of HBM bandwidth) idles.
    if B * math.ceil(D / dt) < 2 and dt > sub:
        dt = max(sub, (dt // 2 // sub) * sub)

    # TODO(synk): when D < 8 and B is large, add a batch tile (Bt, C, D, HW) to
    # amortize per-step overhead / sublane-sparse transfers; skipped here to keep
    # the batch axis fully parallel for the 2-TensorCore case.

    grid = (B, pl.cdiv(D, dt))
    kernel = _make_kernel(C, HW, HW_pad)

    out = pl.pallas_call(
        kernel,
        out_shape=jax.ShapeDtypeStruct((B, C, D, HW_pad), x_ncdhw.dtype),
        grid_spec=pltpu.PrefetchScalarGridSpec(
            num_scalar_prefetch=0,
            grid=grid,
            in_specs=[
                pl.BlockSpec((pl.Squeezed(), C, dt, HW_pad),
                             lambda b, dblk: (b, 0, dblk, 0)),
                pl.BlockSpec(memory_space=pltpu.MemorySpace.SMEM),
            ],
            out_specs=pl.BlockSpec((pl.Squeezed(), C, dt, HW_pad),
                                   lambda b, dblk: (b, 0, dblk, 0)),
        ),
        compiler_params=pltpu.CompilerParams(
            dimension_semantics=("parallel", "parallel"),
            vmem_limit_bytes=vmem_limit),
    )(x_k, w_k)

    if HW_pad != HW:
        out = out[..., :HW]
    return out.reshape(B, C, D, H, W)


def spatial_attention_reference(x, weight, bias):
    # Pure-JAX reference reproducing the PyTorch forward exactly (bias included).
    B, C, D, H, W = x.shape
    scores = jnp.einsum('bcdhw,c->bdhw', x, weight.reshape(-1)) + bias[0]  # (B,D,H,W)
    attn = jax.nn.softmax(scores.reshape(B, D, H * W), axis=-1).reshape(B, 1, D, H, W)
    return attn * x


if __name__ == "__main__":
    key = jax.random.PRNGKey(0)
    kx, kw, kb = jax.random.split(key, 3)

    B, C, D, H, W = 2, 4, 4, 16, 16
    x = jax.random.normal(kx, (B, C, D, H, W), dtype=jnp.float32)

    # Deterministic synthetic Conv3d(in_channels=C, out_channels=1, kernel_size=1) params.
    weight = jax.random.normal(kw, (1, C, 1, 1, 1), dtype=jnp.float32) * 0.5
    bias = jax.random.normal(kb, (1,), dtype=jnp.float32) * 0.1

    out = jax.block_until_ready(spatial_attention(x, weight, bias))
    ref = spatial_attention_reference(x, weight, bias)

    assert out.shape == (B, C, D, H, W)
    assert jnp.allclose(out, ref, atol=1e-5, rtol=1e-5)

    print("KERNEL_OK")
</pallas_src>

<mosaic_0001>
module attributes {stable_mosaic.version = 11 : i64} {
  func.func @kernel(%arg0: i32, %arg1: i32, %arg2: memref<1x4x4x256xf32, #tpu.memory_space<vmem>>, %arg3: memref<4xf32, #tpu.memory_space<smem>>, %arg4: memref<1x4x4x256xf32, #tpu.memory_space<vmem>>) attributes {dimension_semantics = [#tpu.dimension_semantics<parallel>, #tpu.dimension_semantics<parallel>], iteration_bounds = array<i64: 2, 1>, scalar_prefetch = 0 : i64, scratch_operands = 0 : i64, tpu.core_type = #tpu.core_type<tc>, window_params = [{transform_indices = @transform_0, window_bounds = array<i64: 1, 4, 4, 256>}, {transform_indices = @transform_1, window_bounds = array<i64: 4>}, {transform_indices = @transform_2, window_bounds = array<i64: 1, 4, 4, 256>}]} {
    %c0 = arith.constant 0 : index
    %c0_0 = arith.constant 0 : index
    %c0_1 = arith.constant 0 : index
    %c0_2 = arith.constant 0 : index
    %0 = vector.load %arg2[%c0, %c0_0, %c0_1, %c0_2] : memref<1x4x4x256xf32, #tpu.memory_space<vmem>>, vector<1x1x4x256xf32>
    %1 = vector.shape_cast %0 : vector<1x1x4x256xf32> to vector<4x256xf32>
    %c0_3 = arith.constant 0 : index
    %2 = memref.load %arg3[%c0_3] : memref<4xf32, #tpu.memory_space<smem>>
    %3 = vector.broadcast %2 : f32 to vector<4x256xf32>
    %4 = arith.mulf %1, %3 : vector<4x256xf32>
    %c0_4 = arith.constant 0 : index
    %c1 = arith.constant 1 : index
    %c0_5 = arith.constant 0 : index
    %c0_6 = arith.constant 0 : index
    %5 = vector.load %arg2[%c0_4, %c1, %c0_5, %c0_6] : memref<1x4x4x256xf32, #tpu.memory_space<vmem>>, vector<1x1x4x256xf32>
    %6 = vector.shape_cast %5 : vector<1x1x4x256xf32> to vector<4x256xf32>
    %c1_7 = arith.constant 1 : index
    %7 = memref.load %arg3[%c1_7] : memref<4xf32, #tpu.memory_space<smem>>
    %8 = vector.broadcast %7 : f32 to vector<4x256xf32>
    %9 = arith.mulf %6, %8 : vector<4x256xf32>
    %10 = arith.addf %4, %9 : vector<4x256xf32>
    %c0_8 = arith.constant 0 : index
    %c2 = arith.constant 2 : index
    %c0_9 = arith.constant 0 : index
    %c0_10 = arith.constant 0 : index
    %11 = vector.load %arg2[%c0_8, %c2, %c0_9, %c0_10] : memref<1x4x4x256xf32, #tpu.memory_space<vmem>>, vector<1x1x4x256xf32>
    %12 = vector.shape_cast %11 : vector<1x1x4x256xf32> to vector<4x256xf32>
    %c2_11 = arith.constant 2 : index
    %13 = memref.load %arg3[%c2_11] : memref<4xf32, #tpu.memory_space<smem>>
    %14 = vector.broadcast %13 : f32 to vector<4x256xf32>
    %15 = arith.mulf %12, %14 : vector<4x256xf32>
    %16 = arith.addf %10, %15 : vector<4x256xf32>
    %c0_12 = arith.constant 0 : index
    %c3 = arith.constant 3 : index
    %c0_13 = arith.constant 0 : index
    %c0_14 = arith.constant 0 : index
    %17 = vector.load %arg2[%c0_12, %c3, %c0_13, %c0_14] : memref<1x4x4x256xf32, #tpu.memory_space<vmem>>, vector<1x1x4x256xf32>
    %18 = vector.shape_cast %17 : vector<1x1x4x256xf32> to vector<4x256xf32>
    %c3_15 = arith.constant 3 : index
    %19 = memref.load %arg3[%c3_15] : memref<4xf32, #tpu.memory_space<smem>>
    %20 = vector.broadcast %19 : f32 to vector<4x256xf32>
    %21 = arith.mulf %18, %20 : vector<4x256xf32>
    %22 = arith.addf %16, %21 : vector<4x256xf32>
    %cst = arith.constant dense<0xFF800000> : vector<4xf32>
    %23 = vector.multi_reduction <maximumf>, %22, %cst [1] : vector<4x256xf32> to vector<4xf32>
    %24 = vector.shape_cast %23 : vector<4xf32> to vector<4x1xf32>
    %25 = vector.broadcast %24 : vector<4x1xf32> to vector<4x256xf32>
    %26 = arith.subf %22, %25 : vector<4x256xf32>
    %27 = math.exp %26 : vector<4x256xf32>
    %cst_16 = arith.constant dense<0.000000e+00> : vector<4xf32>
    %28 = vector.multi_reduction <add>, %27, %cst_16 [1] : vector<4x256xf32> to vector<4xf32>
    %29 = vector.shape_cast %28 : vector<4xf32> to vector<4x1xf32>
    %30 = tpu.reciprocal %29 : vector<4x1xf32> -> vector<4x1xf32>
    %31 = vector.broadcast %30 : vector<4x1xf32> to vector<4x256xf32>
    %32 = arith.mulf %27, %31 : vector<4x256xf32>
    %c0_17 = arith.constant 0 : index
    %c0_18 = arith.constant 0 : index
    %c0_19 = arith.constant 0 : index
    %c0_20 = arith.constant 0 : index
    %33 = vector.load %arg2[%c0_17, %c0_18, %c0_19, %c0_20] : memref<1x4x4x256xf32, #tpu.memory_space<vmem>>, vector<1x1x4x256xf32>
    %34 = vector.shape_cast %33 : vector<1x1x4x256xf32> to vector<4x256xf32>
    %35 = arith.mulf %32, %34 : vector<4x256xf32>
    %c0_21 = arith.constant 0 : index
    %c0_22 = arith.constant 0 : index
    %c0_23 = arith.constant 0 : index
    %c0_24 = arith.constant 0 : index
    %36 = vector.load %arg4[%c0_21, %c0_22, %c0_23, %c0_24] : memref<1x4x4x256xf32, #tpu.memory_space<vmem>>, vector<1x1x4x256xf32>
    %37 = vector.shape_cast %36 : vector<1x1x4x256xf32> to vector<4x256xf32>
    %38 = vector.shape_cast %35 : vector<4x256xf32> to vector<1x1x4x256xf32>
    tpu.vector_store %arg4[%c0_21, %c0_22, %c0_23, %c0_24], %38 {strides = array<i32>} : memref<1x4x4x256xf32, #tpu.memory_space<vmem>>, vector<1x1x4x256xf32>,
    %c0_25 = arith.constant 0 : index
    %c1_26 = arith.constant 1 : index
    %c0_27 = arith.constant 0 : index
    %c0_28 = arith.constant 0 : index
    %39 = vector.load %arg2[%c0_25, %c1_26, %c0_27, %c0_28] : memref<1x4x4x256xf32, #tpu.memory_space<vmem>>, vector<1x1x4x256xf32>
    %40 = vector.shape_cast %39 : vector<1x1x4x256xf32> to vector<4x256xf32>
    %41 = arith.mulf %32, %40 : vector<4x256xf32>
    %c0_29 = arith.constant 0 : index
    %c1_30 = arith.constant 1 : index
    %c0_31 = arith.constant 0 : index
    %c0_32 = arith.constant 0 : index
    %42 = vector.load %arg4[%c0_29, %c1_30, %c0_31, %c0_32] : memref<1x4x4x256xf32, #tpu.memory_space<vmem>>, vector<1x1x4x256xf32>
    %43 = vector.shape_cast %42 : vector<1x1x4x256xf32> to vector<4x256xf32>
    %44 = vector.shape_cast %41 : vector<4x256xf32> to vector<1x1x4x256xf32>
    tpu.vector_store %arg4[%c0_29, %c1_30, %c0_31, %c0_32], %44 {strides = array<i32>} : memref<1x4x4x256xf32, #tpu.memory_space<vmem>>, vector<1x1x4x256xf32>,
    %c0_33 = arith.constant 0 : index
    %c2_34 = arith.constant 2 : index
    %c0_35 = arith.constant 0 : index
    %c0_36 = arith.constant 0 : index
    %45 = vector.load %arg2[%c0_33, %c2_34, %c0_35, %c0_36] : memref<1x4x4x256xf32, #tpu.memory_space<vmem>>, vector<1x1x4x256xf32>
    %46 = vector.shape_cast %45 : vector<1x1x4x256xf32> to vector<4x256xf32>
    %47 = arith.mulf %32, %46 : vector<4x256xf32>
    %c0_37 = arith.constant 0 : index
    %c2_38 = arith.constant 2 : index
    %c0_39 = arith.constant 0 : index
    %c0_40 = arith.constant 0 : index
    %48 = vector.load %arg4[%c0_37, %c2_38, %c0_39, %c0_40] : memref<1x4x4x256xf32, #tpu.memory_space<vmem>>, vector<1x1x4x256xf32>
    %49 = vector.shape_cast %48 : vector<1x1x4x256xf32> to vector<4x256xf32>
    %50 = vector.shape_cast %47 : vector<4x256xf32> to vector<1x1x4x256xf32>
    tpu.vector_store %arg4[%c0_37, %c2_38, %c0_39, %c0_40], %50 {strides = array<i32>} : memref<1x4x4x256xf32, #tpu.memory_space<vmem>>, vector<1x1x4x256xf32>,
    %c0_41 = arith.constant 0 : index
    %c3_42 = arith.constant 3 : index
    %c0_43 = arith.constant 0 : index
    %c0_44 = arith.constant 0 : index
    %51 = vector.load %arg2[%c0_41, %c3_42, %c0_43, %c0_44] : memref<1x4x4x256xf32, #tpu.memory_space<vmem>>, vector<1x1x4x256xf32>
    %52 = vector.shape_cast %51 : vector<1x1x4x256xf32> to vector<4x256xf32>
    %53 = arith.mulf %32, %52 : vector<4x256xf32>
    %c0_45 = arith.constant 0 : index
    %c3_46 = arith.constant 3 : index
    %c0_47 = arith.constant 0 : index
    %c0_48 = arith.constant 0 : index
    %54 = vector.load %arg4[%c0_45, %c3_46, %c0_47, %c0_48] : memref<1x4x4x256xf32, #tpu.memory_space<vmem>>, vector<1x1x4x256xf32>
    %55 = vector.shape_cast %54 : vector<1x1x4x256xf32> to vector<4x256xf32>
    %56 = vector.shape_cast %53 : vector<4x256xf32> to vector<1x1x4x256xf32>
    tpu.vector_store %arg4[%c0_45, %c3_46, %c0_47, %c0_48], %56 {strides = array<i32>} : memref<1x4x4x256xf32, #tpu.memory_space<vmem>>, vector<1x1x4x256xf32>,
    return
  }
  func.func @transform_0(%arg0: i32, %arg1: i32) -> (i32, i32, i32, i32) {
    %c0_i32 = arith.constant 0 : i32
    %c0_i32_0 = arith.constant 0 : i32
    %c0_i32_1 = arith.constant 0 : i32
    return %arg0, %c0_i32, %arg1, %c0_i32_0 : i32, i32, i32, i32
  }
  func.func @transform_1(%arg0: i32, %arg1: i32) -> i32 {
    %c0_i32 = arith.constant 0 : i32
    %c0_i32_0 = arith.constant 0 : i32
    return %c0_i32 : i32
  }
  func.func @transform_2(%arg0: i32, %arg1: i32) -> (i32, i32, i32, i32) {
    %c0_i32 = arith.constant 0 : i32
    %c0_i32_0 = arith.constant 0 : i32
    %c0_i32_1 = arith.constant 0 : i32
    return %arg0, %c0_i32, %arg1, %c0_i32_0 : i32, i32, i32, i32
  }
}

</mosaic_0001>

<llo_original>
// kernel: tpu_custom_call.1
$region0: #{tpu_custom_call.1}
  #allocation0 [shape = 'u32[]', space=smem, size = 0x4, offset = 0x4, fixed_abs, tag = 'smem constant byte address 0x4 - core index']
  #allocation1 [shape = 'u32[144,128]{1,0:T(1,128)}', space=vmem, size = 0x12000, scoped, tag = 'internal scratch']
  %s0 = inlined_call_operand.hbm [shape: f32[2,4,4,256], index: 0, kind: input, shape index: {}]
  %s1 = inlined_call_operand.vmem [shape: f32[4], index: 1, kind: input, shape index: {}]
  %s2 = inlined_call_operand.hbm [shape: f32[2,4,4,256], index: 2, kind: output, shape index: {}]
  %s3 = sld [smem:[#allocation0]]
  $region49: #{tpu_custom_call.1} parent=0
    _
  %s5 = ssub.s32 1, %s3
  %s6 = scalar_select 0, %s5, %s3
  $region1: #{tpu_custom_call.1} parent=0
    #allocation2 [shape = 'u8[32768]{0}', space=vmem, size = 0x8000, scoped, tag = 'input window, operand 0']
    #allocation3 [shape = 's32[2]{0}', space=sflag, size = 0x8, scoped, tag = 'scoped memory for tpu_custom_call.1']
    #allocation4 [shape = 's32[2]{0}', space=sflag, size = 0x8, scoped, tag = 'scoped memory for tpu_custom_call.1']
    #allocation5 [shape = 's32[2]{0}', space=sflag, size = 0x8, scoped, tag = 'scoped memory for tpu_custom_call.1']
    #allocation6 [shape = 'u8[512]{0}', space=smem, size = 0x200, scoped, tag = 'input window, operand 1, single buffered']
    #allocation7 [shape = 'u8[32768]{0}', space=vmem, size = 0x8000, scoped, tag = 'output window, operand 0']
    %7 = vsyncpa [#allocation3], 0
    %s8 = scalar_lea.sflag [#allocation3], 1
    %9 = vsyncpa %s8, 0
    %10 = vsyncpa [#allocation5], 0
    %11 = vsyncpa [#allocation4], 0
    %s12 = scalar_lea.sflag [#allocation4], 1
    %13 = vsyncpa %s12, 0
    loop: start=0, step=1, limit=4
    $region2: #{tpu_custom_call.1} parent=1 // loop_pre_header
      _
    $region3: #{tpu_custom_call.1} parent=1 // loop_header
      %s15 = sphi 0, %s19
      %p16 = scmp.ge.s32.totalorder %s15, 4
      %s22 = sphi 0, %s34
      %s23 = sphi 0, %s30
      %s24 = sphi 0, %s22
      %s25 = sphi 0, %s23
      %s26 = sphi 0, %s24
      %s27 = sphi 0, %s25
      %s39 = sphi 0, %s41
      %s42 = sphi 0, %s39
      %s43 = sphi 0, %s42
      %s59 = sphi 0, %s43
      %s63 = sphi 0, %s63
      %s65 = sphi 0, %s63
      %s66 = sphi 0, %s65
      %s80 = sphi 0, %s66
      %s88 = sphi 0, %s90
      %s91 = sphi 0, %s88
      %s92 = sphi 0, %s91
      %s108 = sphi 0, %s92
    $region4: #{tpu_custom_call.1} parent=1 // loop_header_branch
      %18 = sbr.rel (%p16) target = $region8
    $region5: #{tpu_custom_call.1} parent=1 // loop_body
      %s20 = ssub.s32 %s15, 1
      %s21 = ssub.s32 %s15, 2
      %s28 = sadd.s32 1, %s23
      %p29 = scmp.ge.s32.totalorder %s28, 1
      %s30 = scalar_select %p29, 0, %s28
      %s31 = sadd.s32 1, %s22
      %s32 = scalar_select %p29, %s31, %s22
      %p33 = scmp.ge.s32.totalorder %s32, 2
      %s34 = scalar_select %p33, 0, %s32
      %s35 = ssub.s32 %s22, %s34
      %s36 = ssub.s32 %s23, %s30
      %s37 = sor.u32 %s35, %s36
      %p38 = scmp.eq.s32.totalorder %s37, 0
      %s40 = sadd.s32 %s39, 1
      %s41 = scalar_select %p38, %s39, %s40
      %p44 = pneg %p38
      %p45 = scmp.eq.s32.totalorder %s15, 1
      %p46 = por %p44, %p45
      %p47 = scmp.ne.s32.totalorder %s39, %s42
      %p48 = scmp.eq.s32.totalorder %s15, 0
      %p49 = por %p47, %p48
      %p50 = scmp.ne.s32.totalorder %s39, %s42
      %p51 = scmp.eq.s32.totalorder %s20, 1
      %p52 = por %p50, %p51
      %p53 = scmp.ne.s32.totalorder %s42, %s43
      %p54 = scmp.eq.s32.totalorder %s20, 0
      %p55 = por %p53, %p54
      %p56 = scmp.ne.s32.totalorder %s42, %s43
      %p57 = scmp.eq.s32.totalorder %s21, 1
      %p58 = por %p56, %p57
      %p60 = scmp.ne.s32.totalorder %s43, %s59
      %p61 = scmp.eq.s32.totalorder %s21, 0
      %p62 = por %p60, %p61
      %s64 = sadd.s32 %s63, 1
      %p67 = scmp.eq.s32.totalorder %s15, 1
      %p68 = scmp.ne.s32.totalorder %s63, %s65
      %p69 = scmp.eq.s32.totalorder %s15, 0
      %p70 = por %p68, %p69
      %p71 = scmp.ne.s32.totalorder %s63, %s65
      %p72 = scmp.eq.s32.totalorder %s20, 1
      %p73 = por %p71, %p72
      %p74 = scmp.ne.s32.totalorder %s65, %s66
      %p75 = scmp.eq.s32.totalorder %s20, 0
      %p76 = por %p74, %p75
      %p77 = scmp.ne.s32.totalorder %s65, %s66
      %p78 = scmp.eq.s32.totalorder %s21, 1
      %p79 = por %p77, %p78
      %p81 = scmp.ne.s32.totalorder %s66, %s80
      %p82 = scmp.eq.s32.totalorder %s21, 0
      %p83 = por %p81, %p82
      %s84 = ssub.s32 %s22, %s34
      %s85 = ssub.s32 %s23, %s30
      %s86 = sor.u32 %s84, %s85
      %p87 = scmp.eq.s32.totalorder %s86, 0
      %s89 = sadd.s32 %s88, 1
      %s90 = scalar_select %p87, %s88, %s89
      %p93 = pneg %p87
      %p94 = scmp.eq.s32.totalorder %s15, 1
      %p95 = por %p93, %p94
      %p96 = scmp.ne.s32.totalorder %s88, %s91
      %p97 = scmp.eq.s32.totalorder %s15, 0
      %p98 = por %p96, %p97
      %p99 = scmp.ne.s32.totalorder %s88, %s91
      %p100 = scmp.eq.s32.totalorder %s20, 1
      %p101 = por %p99, %p100
      %p102 = scmp.ne.s32.totalorder %s91, %s92
      %p103 = scmp.eq.s32.totalorder %s20, 0
      %p104 = por %p102, %p103
      %p105 = scmp.ne.s32.totalorder %s91, %s92
      %p106 = scmp.eq.s32.totalorder %s21, 1
      %p107 = por %p105, %p106
      %p109 = scmp.ne.s32.totalorder %s92, %s108
      %p110 = scmp.eq.s32.totalorder %s21, 0
      %p111 = por %p109, %p110
      %p112 = scmp.le.s32.totalorder 1, %s15
      %p113 = scmp.lt.s32.totalorder %s15, 3
      %p114 = pnand %p112, %p113
      %p115 = pneg %p114
      // Predicated region
      $region9: #{tpu_custom_call.1} parent=5 // pred_check
        _
      $region10: #{tpu_custom_call.1} parent=5 // pred_check_branch
        %117 = sbr.rel (%p114) target = $region12
      $region11: #{tpu_custom_call.1} parent=5 // pred_region
        %s118 = ssub.s32 %s15, 1
        // Predicated region
        $region13: #{tpu_custom_call.1} parent=11 // pred_check
          %p119 = pneg %p76
        $region14: #{tpu_custom_call.1} parent=11 // pred_check_branch
          %121 = sbr.rel (%p119) target = $region16
        $region15: #{tpu_custom_call.1} parent=11 // pred_region
          %s123 = ssub.s32 16, 16
          %124 = vsyncadd [#allocation5], %s123
          %s126 = sshll.u32 %s1, 4
          %s127 = int_to_ptr.vmem [resolvable:$true] %s126
          %129 = dma.vmem_to_smem %s127, 16, [#allocation6], [#allocation5]
        $region16: #{tpu_custom_call.1} parent=11 // pred_fallthru
          _
      $region12: #{tpu_custom_call.1} parent=5 // pred_fallthru
        _
      %p130 = scmp.lt.s32.totalorder %s15, 2
      // Predicated region
      $region17: #{tpu_custom_call.1} parent=5 // pred_check
        %p131 = pneg %p130
      $region18: #{tpu_custom_call.1} parent=5 // pred_check_branch
        %133 = sbr.rel (%p131) target = $region20
      $region19: #{tpu_custom_call.1} parent=5 // pred_region
        // Predicated region
        $region21: #{tpu_custom_call.1} parent=19 // pred_check
          %p134 = pneg %p49
        $region22: #{tpu_custom_call.1} parent=19 // pred_check_branch
          %136 = sbr.rel (%p134) target = $region24
        $region23: #{tpu_custom_call.1} parent=19 // pred_region
          %s137 = sand.u32 %s39, 1
          %s138 = scalar_lea.sflag [#allocation3], %s137
          %s139 = sand.u32 %s39, 1
          %s140 = smul.addr %s139, 32
          %s141 = scalar_lea.vmem [#allocation2], %s140
          %s143 = ssub.s32 512, 512
          %144 = vsyncadd %s138, %s143
          %s145 = smul.addr %s23, 2
          %s146 = smul.addr %s22, 8
          %s147 = sadd.s32 %s145, %s146
          %s148 = smul.addr %s147, 64
          %s149 = scalar_lea.hbm %s0, %s148
          %s150 = sshll.u32 %s141, 4
          %s151 = int_to_ptr.vmem [resolvable:$true] %s150
          %156 = dma.hbm_to_vmem [thread:$0]  %s149, 512, %s151, %s138, 128, 128, 8
        $region24: #{tpu_custom_call.1} parent=19 // pred_fallthru
          _
      $region20: #{tpu_custom_call.1} parent=5 // pred_fallthru
        _
      %p157 = scmp.le.s32.totalorder 1, %s15
      %p158 = scmp.lt.s32.totalorder %s15, 3
      %p159 = pnand %p157, %p158
      %p160 = pneg %p159
      // Predicated region
      $region25: #{tpu_custom_call.1} parent=5 // pred_check
        _
      $region26: #{tpu_custom_call.1} parent=5 // pred_check_branch
        %162 = sbr.rel (%p159) target = $region28
      $region27: #{tpu_custom_call.1} parent=5 // pred_region
        %s163 = ssub.s32 %s15, 1
        %s164 = sand.u32 %s42, 1
        %s165 = scalar_lea.sflag [#allocation3], %s164
        %s166 = sand.u32 %s42, 1
        %s167 = smul.addr %s166, 32
        %s168 = scalar_lea.vmem [#allocation2], %s167
        // Predicated region
        $region29: #{tpu_custom_call.1} parent=27 // pred_check
          %p169 = pneg %p55
        $region30: #{tpu_custom_call.1} parent=27 // pred_check_branch
          %171 = sbr.rel (%p169) target = $region32
        $region31: #{tpu_custom_call.1} parent=27 // pred_region
          %172 = dma.done %s165, 512
        $region32: #{tpu_custom_call.1} parent=27 // pred_fallthru
          _
        // Predicated region
        $region33: #{tpu_custom_call.1} parent=27 // pred_check
          %p173 = pneg %p76
        $region34: #{tpu_custom_call.1} parent=27 // pred_check_branch
          %175 = sbr.rel (%p173) target = $region36
        $region35: #{tpu_custom_call.1} parent=27 // pred_region
          %176 = dma.done [#allocation5], 16
        $region36: #{tpu_custom_call.1} parent=27 // pred_fallthru
          _
        %177 = sfence
        %s178 = sand.u32 %s42, 1
        %s179 = scalar_lea.sflag [#allocation3], %s178
        %s180 = sand.u32 %s42, 1
        %s181 = smul.addr %s180, 32
        %s182 = scalar_lea.vmem [#allocation2], %s181
        %p183 = pneg %p55
        %p184 = pneg %p52
        %p185 = pneg %p76
        %p186 = pneg %p73
        %p187 = pneg %p104
        %p188 = pneg %p101
        %s189 = sand.u32 %s91, 1
        %s190 = scalar_lea.sflag [#allocation4], %s189
        %s191 = sand.u32 %s91, 1
        %s192 = smul.addr %s191, 32
        %s193 = scalar_lea.vmem [#allocation7], %s192
        %v194 = vld [vmem:[%s168] sm:$0xff]
        %s195 = sld [smem:[#allocation6]]
        %v196 = vstv %s195
        %v197 = vmul.f32 %v194, %v196
        %s198 = scalar_lea.vmem %s168, 8 [#allocation2]
        %v199 = vld [vmem:[%s198] sm:$0xff]
        %s200 = sld [smem:[#allocation6 + $0x1]]
        %v201 = vstv %s200
        %v202 = vmul.f32 %v199, %v201
        %v203 = vadd.f32 %v197, %v202
        %s204 = scalar_lea.vmem %s168, 16 [#allocation2]
        %v205 = vld [vmem:[%s204] sm:$0xff]
        %s206 = sld [smem:[#allocation6 + $0x2]]
        %v207 = vstv %s206
        %v208 = vmul.f32 %v205, %v207
        %v209 = vadd.f32 %v203, %v208
        %s210 = scalar_lea.vmem %s168, 24 [#allocation2]
        %v211 = vld [vmem:[%s210] sm:$0xff]
        %s212 = sld [smem:[#allocation6 + $0x3]]
        %v213 = vstv %s212
        %v214 = vmul.f32 %v211, %v213
        %v215 = vadd.f32 %v209, %v214
        %v217 = vcombine.high %v215, %v215
        %vm219 = vcmask 1043456
        %v220 = vsel %vm219, %v215, -inf
        %v221 = vsel %vm219, %v217, -inf
        %v222 = vmax.f32 %v220, %v221
        %223 = vmax.xlane.f32.xlu0 %v222
        %v224 = vpop.xlane.xlu0 %223
        %v227 = vunpack.c.l.s4 839922192
        %v228 = vunpack.c.0.s8 %v227
        %v229 = vlaneseq
        %v230 = vshrl.u32 %v229, 7
        %v231 = vsub.s32 %v228, %v230
        %v232 = vrot.slane %v224, %v231
        %v234 = vsub.f32 %v215, %v232
        %v235 = vmul.f32 %v234, 1.442695
        %v236 = vpow.pop %v235
        %v238 = vcombine.high %v236, %v236
        %v240 = vsel %vm219, %v236, 0.0
        %v241 = vsel %vm219, %v238, 0.0
        %v242 = vadd.f32 %v240, %v241
        %243 = vadd.xlane.f32.xlu0 %v242
        %v244 = vpop.xlane.xlu0 %243
        %v245 = vrcp.pop %v244
        %v248 = vunpack.c.l.s4 839922192
        %v249 = vunpack.c.0.s8 %v248
        %v250 = vlaneseq
        %v251 = vshrl.u32 %v250, 7
        %v252 = vsub.s32 %v249, %v251
        %v253 = vrot.slane %v245, %v252
        %v255 = vmul.f32 %v236, %v253
        %v256 = vmul.f32 %v255, %v194
        %257 = vst [vmem:[%s193] sm:$0xff] %v256
        %v258 = vld [vmem:[%s198] sm:$0xff]
        %v259 = vmul.f32 %v255, %v258
        %s260 = scalar_lea.vmem %s193, 8 [#allocation7]
        %261 = vst [vmem:[%s260] sm:$0xff] %v259
        %v262 = vld [vmem:[%s204] sm:$0xff]
        %v263 = vmul.f32 %v255, %v262
        %s264 = scalar_lea.vmem %s193, 16 [#allocation7]
        %265 = vst [vmem:[%s264] sm:$0xff] %v263
        %v266 = vld [vmem:[%s210] sm:$0xff]
        %v267 = vmul.f32 %v255, %v266
        %s268 = scalar_lea.vmem %s193, 24 [#allocation7]
        %269 = vst [vmem:[%s268] sm:$0xff] %v267
        %s270 = sand.u32 %s91, 1
        %s271 = scalar_lea.sflag [#allocation4], %s270
        %s272 = sand.u32 %s91, 1
        %s273 = smul.addr %s272, 32
        %s274 = scalar_lea.vmem [#allocation7], %s273
        // Predicated region
        $region37: #{tpu_custom_call.1} parent=27 // pred_check
          %p275 = pneg %p101
        $region38: #{tpu_custom_call.1} parent=27 // pred_check_branch
          %277 = sbr.rel (%p275) target = $region40
        $region39: #{tpu_custom_call.1} parent=27 // pred_region
          %s279 = ssub.s32 512, 512
          %280 = vsyncadd %s271, %s279
          %s281 = smul.addr %s25, 2
          %s282 = smul.addr %s24, 8
          %s283 = sadd.s32 %s281, %s282
          %s284 = smul.addr %s283, 64
          %s285 = scalar_lea.hbm %s2, %s284
          %s286 = sshll.u32 %s274, 4
          %s287 = int_to_ptr.vmem [resolvable:$true] %s286
          %292 = dma.vmem_to_hbm [thread:$0]  %s287, 512, %s285, %s271, 128, 128, 8
        $region40: #{tpu_custom_call.1} parent=27 // pred_fallthru
          _
      $region28: #{tpu_custom_call.1} parent=5 // pred_fallthru
        _
      %p293 = scmp.le.s32.totalorder 2, %s15
      // Predicated region
      $region41: #{tpu_custom_call.1} parent=5 // pred_check
        %p294 = pneg %p293
      $region42: #{tpu_custom_call.1} parent=5 // pred_check_branch
        %296 = sbr.rel (%p294) target = $region44
      $region43: #{tpu_custom_call.1} parent=5 // pred_region
        %s297 = ssub.s32 %s15, 2
        // Predicated region
        $region45: #{tpu_custom_call.1} parent=43 // pred_check
          %p298 = pneg %p107
        $region46: #{tpu_custom_call.1} parent=43 // pred_check_branch
          %300 = sbr.rel (%p298) target = $region48
        $region47: #{tpu_custom_call.1} parent=43 // pred_region
          %s301 = sand.u32 %s92, 1
          %s302 = scalar_lea.sflag [#allocation4], %s301
          %s303 = sand.u32 %s92, 1
          %s304 = smul.addr %s303, 32
          %s305 = scalar_lea.vmem [#allocation7], %s304
          %306 = dma.done %s302, 512
        $region48: #{tpu_custom_call.1} parent=43 // pred_fallthru
          _
      $region44: #{tpu_custom_call.1} parent=5 // pred_fallthru
        _
    $region6: #{tpu_custom_call.1} parent=1 // loop_footer
      %s19 = sadd.s32 1, %s15
    $region7: #{tpu_custom_call.1} parent=1 // loop_footer_branch
      %14 = sbr.rel target = $region3
    $region8: #{tpu_custom_call.1} parent=1 // loop_exit
      _
    %307 = vsyncpa [#allocation3], 1
    %s308 = scalar_lea.sflag [#allocation3], 1
    %309 = vsyncpa %s308, 1
    %310 = vsyncpa [#allocation4], 1
    %s311 = scalar_lea.sflag [#allocation4], 1
    %312 = vsyncpa %s311, 1
    %313 = vsyncpa [#allocation5], 1
    %s314 = scalar_lea.sflag [#allocation5], 1
    %315 = vsyncpa %s314, 1

</llo_original>
